<compile_context>
chip_gen: v7x
topology: tpu7x:2x2x1
jax: 0.10.0
libtpu: 0.0.40
codegen_flags: <defaults>
</compile_context>

<pallas_src>
import functools
import math

import jax
import jax.numpy as jnp
from jax.experimental import pallas as pl
from jax.experimental.pallas import tpu as pltpu

# Explicit scoped-VMEM budget: within every generation's default (v5e 16 MiB is the only
# one below this; raise per-kernel if weights grow), safe on v7x's 64 MiB physical.
_VMEM_LIMIT = 32 * 1024 * 1024


def _row_tile(rows, pref=256):
    """Largest row tile <= pref that divides rows (falls back to full rows)."""
    if rows <= pref:
        return rows
    for t in (pref, 512, 128, 64, 32, 16, 8):
        if rows % t == 0:
            return t
    return rows


def _time_chunk(n, pref=64):
    if n <= pref:
        return n
    for t in (pref, 128, 32, 256, 16, 8):
        if n % t == 0:
            return t
    return n


# -----------------------------------------------------------------------------
# Generic row-tiled linear: (rows, din) @ (din, dout) + b, grid over row tiles.
# Used for the attention query projection, fused K|V projection and mel|stop head.
# -----------------------------------------------------------------------------
def linear_kernel(x_ref, w_ref, b_ref, o_ref):
    o_ref[...] = (jnp.dot(x_ref[...], w_ref[...], preferred_element_type=jnp.float32)
                  + b_ref[...]).astype(o_ref.dtype)


def tiled_linear(x, w, b, out_dtype):
    rows, din = x.shape
    dout = w.shape[1]
    rt = _row_tile(rows)
    return pl.pallas_call(
        linear_kernel,
        grid=(rows // rt,),
        in_specs=[pl.BlockSpec((rt, din), lambda i: (i, 0)),
                  pl.BlockSpec((din, dout), lambda i: (0, 0)),
                  pl.BlockSpec((1, dout), lambda i: (0, 0))],
        out_specs=pl.BlockSpec((rt, dout), lambda i: (i, 0)),
        out_shape=jax.ShapeDtypeStruct((rows, dout), out_dtype),
        compiler_params=pltpu.CompilerParams(
            dimension_semantics=("parallel",), vmem_limit_bytes=_VMEM_LIMIT),
    )(x, w, b)


# -----------------------------------------------------------------------------
# Multi-head attention: grid over batch ("parallel"), all heads of one batch element
# per step; 1/sqrt(hd) already folded into the query weights; softmax in f32.
# -----------------------------------------------------------------------------
def mha_kernel(q_ref, k_ref, v_ref, o_ref):
    f32 = jnp.float32
    q = q_ref[0]                                       # (nh, Tdec, hd) bf16
    k = k_ref[0]                                       # (nh, Tenc, hd) bf16
    v = v_ref[0]
    s = jnp.einsum('hqd,hkd->hqk', q, k, preferred_element_type=f32)
    m = jnp.max(s, axis=-1, keepdims=True)
    e = jnp.exp(s - m)
    p = e * pl.reciprocal(jnp.sum(e, axis=-1, keepdims=True), approx=True)
    ctx = jnp.einsum('hqk,hkd->hqd', p.astype(v.dtype), v, preferred_element_type=f32)
    o_ref[0] = ctx.astype(o_ref.dtype)


# -----------------------------------------------------------------------------
# LSTM layer-0 input gate pre-activations for every step (non-recurrent part):
#   gin0 = ctx @ (Wo @ W_ih0_ctx) + x @ W_ih0_mel + b   (attention out_proj folded in).
# Row-tiled grid over the Tdec*B rows, "parallel".
# -----------------------------------------------------------------------------
def pregate_kernel(ctx_ref, x_ref, w_cg_ref, w_xg_ref, b_ref, o_ref):
    f32 = jnp.float32
    o_ref[...] = (jnp.dot(ctx_ref[...], w_cg_ref[...], preferred_element_type=f32)
                  + jnp.dot(x_ref[...], w_xg_ref[...], preferred_element_type=f32)
                  + b_ref[...]).astype(o_ref.dtype)


# -----------------------------------------------------------------------------
# Serial 2-layer LSTM recurrence (the only sequential part).
#   grid = (batch_tiles ["parallel"], Tdec chunks ["arbitrary"])
#   LSTM state lives in VMEM scratch across Tdec chunks (reset at chunk 0); within a
#   chunk the state is carried in vregs via fori_loop (small unroll factor).
#   Layer 1 uses one fused [h0; h1] @ [W_ih1; W_hh1] matmul. Gates packed (i, f, o | g).
# -----------------------------------------------------------------------------
def decode_kernel(gin0_ref, w_hh0_ref, w_cat1_ref, b_g1_ref, h1_ref, state_ref):
    f32, bf16 = jnp.float32, jnp.bfloat16
    Tc = gin0_ref.shape[0]
    H = w_hh0_ref.shape[0]

    @pl.when(pl.program_id(1) == 0)                    # new batch tile -> zero state
    def _():
        state_ref[...] = jnp.zeros_like(state_ref)

    def step(s, carry):
        h0, c0, h1, c1 = carry
        # Layer 0: input part precomputed (gin0); only the h-recurrence matmul here.
        g0 = gin0_ref[s] + jnp.dot(h0.astype(bf16), w_hh0_ref[...],
                                   preferred_element_type=f32)
        sg0 = jax.nn.sigmoid(g0[:, :3 * H])            # one contiguous sigmoid slab
        i0, f0, o0 = sg0[:, :H], sg0[:, H:2 * H], sg0[:, 2 * H:]
        c0n = f0 * c0 + i0 * jnp.tanh(g0[:, 3 * H:])
        h0n = o0 * jnp.tanh(c0n)

        # Layer 1 (inter-layer dropout is identity in eval mode): one fused matmul.
        hcat = jnp.concatenate([h0n, h1], axis=1).astype(bf16)
        g1 = jnp.dot(hcat, w_cat1_ref[...], preferred_element_type=f32) + b_g1_ref[...]
        sg1 = jax.nn.sigmoid(g1[:, :3 * H])
        i1, f1, o1 = sg1[:, :H], sg1[:, H:2 * H], sg1[:, 2 * H:]
        c1n = f1 * c1 + i1 * jnp.tanh(g1[:, 3 * H:])
        h1n = o1 * jnp.tanh(c1n)

        h1_ref[s] = h1n.astype(h1_ref.dtype)           # top-layer hidden state (bf16)
        return h0n, c0n, h1n, c1n

    carry0 = (state_ref[0], state_ref[1], state_ref[2], state_ref[3])
    h0, c0, h1, c1 = jax.lax.fori_loop(0, Tc, step, carry0, unroll=min(4, Tc))
    state_ref[0] = h0
    state_ref[1] = c0
    state_ref[2] = h1
    state_ref[3] = c1


# -----------------------------------------------------------------------------
# Postnet Conv1d(k=5, pad=2) (+ folded BN + tanh), channels-last.
# grid = (batch ["parallel"], time tiles ["parallel"]); the padded input block stays
# resident per batch element, the output/accumulator is time-tiled.
# Conv expressed as K shifted (Tt, Cin) @ (Cin, Cout) MXU matmuls.
# -----------------------------------------------------------------------------
def conv_kernel(x_ref, w_ref, b_ref, o_ref, *, apply_tanh, t_tile, n_t):
    K = w_ref.shape[0]
    Cout = o_ref.shape[2]
    if n_t == 1:
        x = x_ref[0]                                           # (T + K - 1, Cin)
    else:
        x = x_ref[0, pl.ds(pl.program_id(1) * t_tile, t_tile + K - 1), :]
    acc = jnp.zeros((t_tile, Cout), jnp.float32) + b_ref[...]
    # TODO(synk): the K shifted sublane slices may each materialize a copy of the block;
    #             if the bundle dump confirms it, switch to pltpu.roll-based shifts.
    for k in range(K):
        acc = acc + jnp.dot(x[k:k + t_tile, :], w_ref[k],
                            preferred_element_type=jnp.float32)
    if apply_tanh:
        acc = jnp.tanh(acc)
    o_ref[0] = acc.astype(o_ref.dtype)


def postnet_forward(x_bf16, layers):
    """x_bf16: (B, T, n_mels) bf16 -> (B, T, n_mels) f32 (pre-residual)."""
    h = x_bf16
    n = len(layers)
    for i, lyr in enumerate(layers):
        Bx, T, Cin = h.shape
        K, _, Cout = lyr["w"].shape
        last = (i == n - 1)                            # last conv: no BN, no tanh (as in ref)
        t_tile = _time_chunk(T, pref=256)
        n_t = T // t_tile
        h_pad = jnp.pad(h, ((0, 0), (K // 2, K // 2), (0, 0)))
        h = pl.pallas_call(
            functools.partial(conv_kernel, apply_tanh=not last, t_tile=t_tile, n_t=n_t),
            grid=(Bx, n_t),
            in_specs=[pl.BlockSpec((1, T + K - 1, Cin), lambda b, t: (b, 0, 0)),
                      pl.BlockSpec((K, Cin, Cout), lambda b, t: (0, 0, 0)),
                      pl.BlockSpec((1, Cout), lambda b, t: (0, 0))],
            out_specs=pl.BlockSpec((1, t_tile, Cout), lambda b, t: (b, t, 0)),
            out_shape=jax.ShapeDtypeStruct((Bx, T, Cout),
                                           jnp.float32 if last else jnp.bfloat16),
            compiler_params=pltpu.CompilerParams(
                dimension_semantics=("parallel", "parallel"),
                vmem_limit_bytes=_VMEM_LIMIT),
        )(h_pad, lyr["w"], lyr["b"])
    return h


# -----------------------------------------------------------------------------
# Full forward (teacher forced).
# -----------------------------------------------------------------------------
def attention_decoder_forward(encoder_outputs, mel_targets, params):
    f32, bf16 = jnp.float32, jnp.bfloat16
    p = params
    B, Tenc, D = encoder_outputs.shape
    Tdec, n_mels = mel_targets.shape[1], mel_targets.shape[2]
    H = D
    nh = p["n_heads"]
    hd = D // nh

    # Teacher-forced decoder inputs: step 0 is zeros, step s>0 is mel_targets[:, s-1].
    dec_in = jnp.concatenate(
        [jnp.zeros((B, 1, n_mels), f32), mel_targets[:, :Tdec - 1, :]], axis=1)
    dec_flat = dec_in.transpose(1, 0, 2).reshape(Tdec * B, n_mels).astype(bf16)
    enc_flat = encoder_outputs.reshape(B * Tenc, D).astype(bf16)

    # (1) Queries for all steps (scale + input_projection folded in) and fused K|V.
    q = tiled_linear(dec_flat, p["wq_eff"], p["bq_eff"], bf16)       # (Tdec*B, D)
    kv = tiled_linear(enc_flat, p["w_kv"], p["b_kv"], bf16)          # (B*Tenc, 2D)
    k, v = kv[:, :D], kv[:, D:]

    # Head-split layout plumbing (wrapper-side reshapes/transposes, bf16, no compute).
    q_h = q.reshape(Tdec, B, nh, hd).transpose(1, 2, 0, 3)           # (B, nh, Tdec, hd)
    k_h = k.reshape(B, Tenc, nh, hd).transpose(0, 2, 1, 3)           # (B, nh, Tenc, hd)
    v_h = v.reshape(B, Tenc, nh, hd).transpose(0, 2, 1, 3)

    # (2) Attention: grid over batch ("parallel"), all heads per block.
    ctx_h = pl.pallas_call(
        mha_kernel,
        grid=(B,),
        in_specs=[pl.BlockSpec((1, nh, Tdec, hd), lambda b: (b, 0, 0, 0)),
                  pl.BlockSpec((1, nh, Tenc, hd), lambda b: (b, 0, 0, 0)),
                  pl.BlockSpec((1, nh, Tenc, hd), lambda b: (b, 0, 0, 0))],
        out_specs=pl.BlockSpec((1, nh, Tdec, hd), lambda b: (b, 0, 0, 0)),
        out_shape=jax.ShapeDtypeStruct((B, nh, Tdec, hd), bf16),
        compiler_params=pltpu.CompilerParams(
            dimension_semantics=("parallel",), vmem_limit_bytes=_VMEM_LIMIT),
    )(q_h, k_h, v_h)
    ctx = ctx_h.transpose(2, 0, 1, 3).reshape(Tdec * B, D)           # step-major rows, bf16

    # (3) Non-recurrent LSTM layer-0 gate pre-activations, row-tiled grid.
    rows = Tdec * B
    rt = _row_tile(rows)
    gin0 = pl.pallas_call(
        pregate_kernel,
        grid=(rows // rt,),
        in_specs=[pl.BlockSpec((rt, D), lambda i: (i, 0)),
                  pl.BlockSpec((rt, n_mels), lambda i: (i, 0)),
                  pl.BlockSpec((D, 4 * H), lambda i: (0, 0)),
                  pl.BlockSpec((n_mels, 4 * H), lambda i: (0, 0)),
                  pl.BlockSpec((1, 4 * H), lambda i: (0, 0))],
        out_specs=pl.BlockSpec((rt, 4 * H), lambda i: (i, 0)),
        out_shape=jax.ShapeDtypeStruct((rows, 4 * H), f32),
        compiler_params=pltpu.CompilerParams(
            dimension_semantics=("parallel",), vmem_limit_bytes=_VMEM_LIMIT),
    )(ctx, dec_flat, p["w_cg"], p["w_xg"], p["b_g0"])

    # (4) Serial LSTM recurrence: batch tiles ("parallel", v7x megacore when B/2 >= 16),
    #     Tdec chunks ("arbitrary") streaming gin0 / h1_seq, state in VMEM scratch.
    Bt = B if B < 32 else (B // 2 if B % 2 == 0 else B)
    Tc = _time_chunk(Tdec, pref=64)
    h1_seq = pl.pallas_call(
        decode_kernel,
        grid=(B // Bt, Tdec // Tc),
        in_specs=[pl.BlockSpec((Tc, Bt, 4 * H), lambda b, c: (c, b, 0)),
                  pl.BlockSpec((H, 4 * H), lambda b, c: (0, 0)),
                  pl.BlockSpec((2 * H, 4 * H), lambda b, c: (0, 0)),
                  pl.BlockSpec((1, 4 * H), lambda b, c: (0, 0))],
        out_specs=pl.BlockSpec((Tc, Bt, H), lambda b, c: (c, b, 0)),
        out_shape=jax.ShapeDtypeStruct((Tdec, B, H), bf16),
        scratch_shapes=[pltpu.VMEM((4, Bt, H), f32)],
        compiler_params=pltpu.CompilerParams(
            dimension_semantics=("parallel", "arbitrary"),
            vmem_limit_bytes=_VMEM_LIMIT),
    )(gin0.reshape(Tdec, B, 4 * H), p["w_hh0"], p["w_cat1"], p["b_g1"])

    # (5) mel + stop heads, lane-dense (padded to 128 cols), row-tiled grid.
    P = p["w_head"].shape[1]
    mel_stop = tiled_linear(h1_seq.reshape(Tdec * B, H), p["w_head"], p["b_head"], f32)
    mel_stop = mel_stop.reshape(Tdec, B, P).transpose(1, 0, 2)       # (B, Tdec, P)
    mel_outputs = mel_stop[:, :, :n_mels]                            # (B, Tdec, n_mels)
    stop_outputs = mel_stop[:, :, n_mels:n_mels + 1]                 # (B, Tdec, 1), logits

    # (6) Postnet + residual.
    mel_postnet = mel_outputs + postnet_forward(mel_outputs.astype(bf16), p["postnet"])
    return mel_outputs, mel_postnet, stop_outputs


# -----------------------------------------------------------------------------
# Deterministic synthetic parameters (shapes follow the nn.Module), with one-time
# host-side folding into kernel-ready form. Matmul weights stored in bf16.
# -----------------------------------------------------------------------------
def init_params(key, enc_dim, dec_dim, n_mels, n_heads, post_ch):
    assert enc_dim == dec_dim, "MultiheadAttention(embed_dim=decoder_dim) requires enc==dec"
    keys = iter(jax.random.split(key, 64))

    def rnd(shape, scale=0.1):
        return jax.random.normal(next(keys), shape, jnp.float32) * scale

    D = dec_dim
    H = dec_dim
    hd = D // n_heads
    bf16 = jnp.bfloat16

    # Raw parameters, x @ W convention (i.e. transposed relative to torch Linear weights).
    w_ip, b_ip = rnd((n_mels, D)), rnd((1, D))             # input_projection
    wq, bq = rnd((D, D)), rnd((1, D))                      # MHA in_proj (q, k, v) + out_proj
    wk, bk = rnd((D, D)), rnd((1, D))
    wv, bv = rnd((D, D)), rnd((1, D))
    wo, bo = rnd((D, D)), rnd((1, D))
    # LSTM layer 0: input = concat([attn_out (enc_dim), mel (n_mels)]); gate order (i,f,o,g).
    w_ih0_ctx, w_ih0_x = rnd((enc_dim, 4 * H)), rnd((n_mels, 4 * H))
    w_hh0, b_g0_raw = rnd((H, 4 * H)), rnd((1, 4 * H))     # b_ih0 + b_hh0 combined
    w_ih1, w_hh1, b_g1 = rnd((H, 4 * H)), rnd((H, 4 * H)), rnd((1, 4 * H))
    w_mel, b_mel = rnd((H, n_mels)), rnd((1, n_mels))
    w_stop, b_stop = rnd((H, 1)), rnd((1, 1))

    # One-time folding (identical forward function, fewer ops on the critical path).
    scale = 1.0 / math.sqrt(hd)
    wq_eff = (w_ip @ wq) * scale                           # input_projection + softmax scale
    bq_eff = (b_ip @ wq + bq) * scale
    w_kv = jnp.concatenate([wk, wv], axis=1)               # fused K|V projection
    b_kv = jnp.concatenate([bk, bv], axis=1)
    w_cg = wo @ w_ih0_ctx                                  # attention out_proj -> LSTM W_ih
    b_g0 = b_g0_raw + bo @ w_ih0_ctx
    w_cat1 = jnp.concatenate([w_ih1, w_hh1], axis=0)       # fused layer-1 recurrence matmul

    # mel|stop head padded to a lane-dense 128-multiple output width.
    head_w = jnp.concatenate([w_mel, w_stop], axis=1)      # (H, n_mels + 1)
    head_b = jnp.concatenate([b_mel, b_stop], axis=1)
    P = ((n_mels + 1 + 127) // 128) * 128
    w_head = jnp.pad(head_w, ((0, 0), (0, P - (n_mels + 1))))
    b_head = jnp.pad(head_b, ((0, 0), (0, P - (n_mels + 1))))

    params = dict(
        n_heads=n_heads,
        wq_eff=wq_eff.astype(bf16), bq_eff=bq_eff,
        w_kv=w_kv.astype(bf16), b_kv=b_kv,
        w_cg=w_cg.astype(bf16), w_xg=w_ih0_x.astype(bf16), b_g0=b_g0,
        w_hh0=w_hh0.astype(bf16), w_cat1=w_cat1.astype(bf16), b_g1=b_g1,
        w_head=w_head.astype(bf16), b_head=b_head,
    )

    # Postnet: Conv1d(k=5, pad=2) weights in (K, Cin, Cout) layout; eval-mode BN folded in.
    chans = [(n_mels, post_ch), (post_ch, post_ch), (post_ch, post_ch),
             (post_ch, post_ch), (post_ch, n_mels)]
    layers = []
    for i, (cin, cout) in enumerate(chans):
        w = rnd((5, cin, cout))
        b = rnd((1, cout))
        if i < len(chans) - 1:                             # last conv has no BN / no tanh
            gamma = 1.0 + rnd((1, cout))
            beta = rnd((1, cout))
            mean = rnd((1, cout))
            var = 1.0 + jnp.abs(rnd((1, cout)))
            s = gamma * jax.lax.rsqrt(var + 1e-5)
            w = w * s[None]                                # fold BN into conv weight
            b = (b - mean) * s + beta                      # ... and into conv bias
        layers.append(dict(w=w.astype(bf16), b=b))
    params["postnet"] = layers
    return params


if __name__ == "__main__":
    # Small, lane-friendly shapes consistent with the module (encoder_dim == decoder_dim).
    B, T_ENC, T_DEC = 2, 8, 8
    ENC_DIM = DEC_DIM = 128
    N_MELS = 32
    N_HEADS = 8
    POST_CH = 128

    key = jax.random.PRNGKey(0)
    k_params, k_enc, k_mel = jax.random.split(key, 3)

    params = init_params(k_params, ENC_DIM, DEC_DIM, N_MELS, N_HEADS, POST_CH)
    encoder_outputs = jax.random.normal(k_enc, (B, T_ENC, ENC_DIM), jnp.float32)
    mel_targets = jax.random.normal(k_mel, (B, T_DEC, N_MELS), jnp.float32)

    mel_outputs, mel_postnet, stop_outputs = attention_decoder_forward(
        encoder_outputs, mel_targets, params)

    jax.block_until_ready((mel_outputs, mel_postnet, stop_outputs))
    assert mel_outputs.shape == (B, T_DEC, N_MELS)
    assert mel_postnet.shape == (B, T_DEC, N_MELS)
    assert stop_outputs.shape == (B, T_DEC, 1)
    print("KERNEL_OK")
</pallas_src>

<mosaic_0001>
module attributes {stable_mosaic.version = 11 : i64} {
  func.func @linear_kernel(%arg0: i32, %arg1: memref<16x32xbf16, #tpu.memory_space<vmem>>, %arg2: memref<32x128xbf16, #tpu.memory_space<vmem>>, %arg3: memref<1x128xf32, #tpu.memory_space<vmem>>, %arg4: memref<16x128xbf16, #tpu.memory_space<vmem>>) attributes {dimension_semantics = [#tpu.dimension_semantics<parallel>], iteration_bounds = array<i64: 1>, scalar_prefetch = 0 : i64, scratch_operands = 0 : i64, tpu.core_type = #tpu.core_type<tc>, window_params = [{transform_indices = @transform_0, window_bounds = array<i64: 16, 32>}, {pipeline_mode = #tpu.pipeline_mode<synchronous>, transform_indices = @transform_1, window_bounds = array<i64: 32, 128>}, {pipeline_mode = #tpu.pipeline_mode<synchronous>, transform_indices = @transform_2, window_bounds = array<i64: 1, 128>}, {transform_indices = @transform_3, window_bounds = array<i64: 16, 128>}]} {
    %c0 = arith.constant 0 : index
    %c0_0 = arith.constant 0 : index
    %0 = vector.load %arg1[%c0, %c0_0] : memref<16x32xbf16, #tpu.memory_space<vmem>>, vector<16x32xbf16>
    %c0_1 = arith.constant 0 : index
    %c0_2 = arith.constant 0 : index
    %1 = vector.load %arg2[%c0_1, %c0_2] : memref<32x128xbf16, #tpu.memory_space<vmem>>, vector<32x128xbf16>
    %cst = arith.constant dense<0.000000e+00> : vector<16x128xf32>
    %2 = tpu.matmul %0, %1, %cst {dimension_numbers = #tpu.dot_dimension_numbers<[1], [0], [0], [1], [0, 0, 1, 1], [], []>} : vector<16x32xbf16>, vector<32x128xbf16>, vector<16x128xf32> -> vector<16x128xf32>
    %c0_3 = arith.constant 0 : index
    %c0_4 = arith.constant 0 : index
    %3 = vector.load %arg3[%c0_3, %c0_4] : memref<1x128xf32, #tpu.memory_space<vmem>>, vector<1x128xf32>
    %4 = vector.broadcast %3 : vector<1x128xf32> to vector<16x128xf32>
    %5 = arith.addf %2, %4 : vector<16x128xf32>
    %6 = arith.truncf %5 : vector<16x128xf32> to vector<16x128xbf16>
    %c0_5 = arith.constant 0 : index
    %c0_6 = arith.constant 0 : index
    %7 = vector.load %arg4[%c0_5, %c0_6] : memref<16x128xbf16, #tpu.memory_space<vmem>>, vector<16x128xbf16>
    tpu.vector_store %arg4[%c0_5, %c0_6], %6 {strides = array<i32>} : memref<16x128xbf16, #tpu.memory_space<vmem>>, vector<16x128xbf16>,
    return
  }
  func.func @transform_0(%arg0: i32) -> (i32, i32) {
    %c0_i32 = arith.constant 0 : i32
    %c0_i32_0 = arith.constant 0 : i32
    return %arg0, %c0_i32 : i32, i32
  }
  func.func @transform_1(%arg0: i32) -> (i32, i32) {
    %c0_i32 = arith.constant 0 : i32
    %c0_i32_0 = arith.constant 0 : i32
    %c0_i32_1 = arith.constant 0 : i32
    return %c0_i32, %c0_i32_0 : i32, i32
  }
  func.func @transform_2(%arg0: i32) -> (i32, i32) {
    %c0_i32 = arith.constant 0 : i32
    %c0_i32_0 = arith.constant 0 : i32
    %c0_i32_1 = arith.constant 0 : i32
    return %c0_i32, %c0_i32_0 : i32, i32
  }
  func.func @transform_3(%arg0: i32) -> (i32, i32) {
    %c0_i32 = arith.constant 0 : i32
    %c0_i32_0 = arith.constant 0 : i32
    return %arg0, %c0_i32 : i32, i32
  }
}

</mosaic_0001>

<llo_original>
// kernel: tpu_custom_call.1
$region0: #{tpu_custom_call.1}
  #allocation0 [shape = 'u32[]', space=smem, size = 0x4, offset = 0x4, fixed_abs, tag = 'smem constant byte address 0x4 - core index']
  #allocation1 [shape = 'u32[144,128]{1,0:T(1,128)}', space=vmem, size = 0x12000, scoped, tag = 'internal scratch']
  %s0 = inlined_call_operand.hbm [shape: bf16[16,32], index: 0, kind: input, shape index: {}]
  %s1 = inlined_call_operand.hbm [shape: bf16[32,128], index: 1, kind: input, shape index: {}]
  %s2 = inlined_call_operand.vmem [shape: f32[1,128], index: 2, kind: input, shape index: {}]
  %s3 = inlined_call_operand.hbm [shape: bf16[16,128], index: 3, kind: output, shape index: {}]
  %s4 = sld [smem:[#allocation0]]
  $region30: #{tpu_custom_call.1} parent=0
    _
  %s6 = ssub.s32 1, %s4
  %s7 = scalar_select 0, %s6, %s4
  $region1: #{tpu_custom_call.1} parent=0
    #allocation2 [shape = 'u8[4096]{0}', space=vmem, size = 0x1000, scoped, tag = 'input window, operand 0, single buffered']
    #allocation3 [shape = 's32[1]{0}', space=sflag, size = 0x4, scoped, tag = 'scoped memory for tpu_custom_call.1']
    #allocation4 [shape = 's32[1]{0}', space=sflag, size = 0x4, scoped, tag = 'scoped memory for tpu_custom_call.1']
    #allocation5 [shape = 'u8[8192]{0}', space=vmem, size = 0x2000, scoped, tag = 'input window, operand 1, single buffered']
    #allocation6 [shape = 's32[1]{0}', space=sflag, size = 0x4, scoped, tag = 'scoped memory for tpu_custom_call.1']
    #allocation7 [shape = 'u8[4096]{0}', space=vmem, size = 0x1000, scoped, tag = 'output window, operand 0, single buffered']
    %8 = vsyncpa [#allocation3], 0
    %9 = vsyncpa [#allocation6], 0
    %10 = vsyncpa [#allocation4], 0
    // Predicated region
    $region2: #{tpu_custom_call.1} parent=1 // pred_check
      _
    $region3: #{tpu_custom_call.1} parent=1 // pred_check_branch
      %12 = sbr.rel (0) target = $region5
    $region4: #{tpu_custom_call.1} parent=1 // pred_region
      %s14 = ssub.s32 128, 128
      %15 = vsyncadd [#allocation3], %s14
      %s16 = sshll.u32 [#allocation2], 4
      %s17 = int_to_ptr.vmem [resolvable:$true] %s16
      %22 = dma.hbm_to_vmem [thread:$0]  %s0, 128, %s17, [#allocation3], 64, 64, 4
    $region5: #{tpu_custom_call.1} parent=1 // pred_fallthru
      _
    // Predicated region
    $region6: #{tpu_custom_call.1} parent=1 // pred_check
      _
    $region7: #{tpu_custom_call.1} parent=1 // pred_check_branch
      %24 = sbr.rel (0) target = $region9
    $region8: #{tpu_custom_call.1} parent=1 // pred_region
      %s26 = ssub.s32 256, 256
      %27 = vsyncadd [#allocation6], %s26
      %s28 = sshll.u32 [#allocation5], 4
      %s29 = int_to_ptr.vmem [resolvable:$true] %s28
      %34 = dma.hbm_to_vmem [thread:$0]  %s1, 256, %s29, [#allocation6], 64, 64, 4
    $region9: #{tpu_custom_call.1} parent=1 // pred_fallthru
      _
    // Predicated region
    $region10: #{tpu_custom_call.1} parent=1 // pred_check
      _
    $region11: #{tpu_custom_call.1} parent=1 // pred_check_branch
      %36 = sbr.rel (0) target = $region13
    $region12: #{tpu_custom_call.1} parent=1 // pred_region
      _
    $region13: #{tpu_custom_call.1} parent=1 // pred_fallthru
      _
    // Predicated region
    $region14: #{tpu_custom_call.1} parent=1 // pred_check
      _
    $region15: #{tpu_custom_call.1} parent=1 // pred_check_branch
      %38 = sbr.rel (0) target = $region17
    $region16: #{tpu_custom_call.1} parent=1 // pred_region
      %39 = dma.done [#allocation3], 128
    $region17: #{tpu_custom_call.1} parent=1 // pred_fallthru
      _
    // Predicated region
    $region18: #{tpu_custom_call.1} parent=1 // pred_check
      _
    $region19: #{tpu_custom_call.1} parent=1 // pred_check_branch
      %41 = sbr.rel (0) target = $region21
    $region20: #{tpu_custom_call.1} parent=1 // pred_region
      %42 = dma.done [#allocation6], 256
    $region21: #{tpu_custom_call.1} parent=1 // pred_fallthru
      _
    %v44 = vld [vmem:[#allocation2] sm:$0xf]
    %v45 = vld [vmem:[#allocation2 + $0x4] sm:$0xf]
    %v46 = vld [vmem:[#allocation5] sm:$0xf]
    %v47 = vld [vmem:[#allocation5 + $0x4] sm:$0xf]
    %v48 = vld [vmem:[#allocation5 + $0x8] sm:$0xf]
    %v49 = vld [vmem:[#allocation5 + $0xc] sm:$0xf]
    %v50 = vld [vmem:[%s2] sm:$0x1]
    %v52 = vlaneseq
    %v53 = vshrl.u32 %v52, 7
    %v54 = vsub.s32 0, %v53
    %v55 = vrot.slane %v50, %v54
    %v59 = vunpack.c.l.b16 %v44
    %v60 = vunpack.c.l.b16 %v45
    %v61 = vpack.c.b16 %v60, %v59
    %v66 = vunpack.c.l.b16 %v46
    %v67 = vunpack.c.l.b16 %v47
    %v68 = vunpack.c.l.b16 %v48
    %v69 = vunpack.c.l.b16 %v49
    %v70 = vpack.c.b16 %v67, %v66
    %v71 = vpack.c.b16 %v69, %v68
    %vm74 = vcmask 261120
    %v76 = vsel %vm74, %v61, 0
    %78 = vmatprep.subr.bf16.mxu0 0
    %79 = vmatpush1.bf16.msra.mxu0 %v70
    %80 = vmatprep.subr.bf16.mxu0 0
    %81 = vmatpush1.bf16.msra.mxu0 %v71
    %82 = vmatprep.subr.bf16.mxu0 0
    %83 = vmatpush1.bf16.msra.mxu0 0
    %84 = vmatprep.subr.bf16.mxu0 0
    %85 = vmatpush1.bf16.msra.mxu0 0
    %86 = vmatprep.subr.bf16.mxu0 0
    %87 = vmatpush1.bf16.msra.mxu0 0
    %88 = vmatprep.subr.bf16.mxu0 0
    %89 = vmatpush1.bf16.msra.mxu0 0
    %90 = vmatprep.subr.bf16.mxu0 0
    %91 = vmatpush1.bf16.msra.mxu0 0
    %92 = vmatprep.subr.bf16.mxu0 0
    %93 = vmatpush1.bf16.msra.mxu0 0
    %94 = vmatprep.subr.bf16.mxu0 0
    %95 = vmatpush1.bf16.msra.mxu0 0
    %96 = vmatprep.subr.bf16.mxu0 0
    %97 = vmatpush1.bf16.msra.mxu0 0
    %98 = vmatprep.subr.bf16.mxu0 0
    %99 = vmatpush1.bf16.msra.mxu0 0
    %100 = vmatprep.subr.bf16.mxu0 0
    %101 = vmatpush1.bf16.msra.mxu0 0
    %102 = vmatprep.subr.bf16.mxu0 0
    %103 = vmatpush1.bf16.msra.mxu0 0
    %104 = vmatprep.subr.bf16.mxu0 0
    %105 = vmatpush1.bf16.msra.mxu0 0
    %106 = vmatprep.subr.bf16.mxu0 0
    %107 = vmatpush1.bf16.msra.mxu0 0
    %108 = vmatprep.subr.bf16.mxu0 0
    %109 = vmatpush1.bf16.msra.mxu0 0
    %110 = vmatprep.mubr.bf16.mxu0 0
    %111 = vmatmul.mubr.bf16.gmra.mrb[0].mxu0 %v76
    %v112 = vpop.f32.mrb[0].mxu0
    %v113 = vadd.f32 %v55, %v112
    %v114 = vpop.f32.mrb[0].mxu0
    %v115 = vpop.f32.mrb[0].mxu0
    %v116 = vadd.f32 %v55, %v115
    %v117 = vpop.f32.mrb[0].mxu0
    %118 = vdwg.mxu0
    %v119 = vpack.c.bf16 %v116, %v113
    %v121 = vunpack.c.l.b16 %v119
    %v122 = vunpack.c.h.b16 %v119
    %v123 = vpack.c.b16 %v121, %v121
    %v124 = vpack.c.b16 %v122, %v122
    %127 = vst [vmem:[#allocation7] sm:$0xf] %v123
    %128 = vst [vmem:[#allocation7 + $0x4] sm:$0xf] %v124
    // Predicated region
    $region22: #{tpu_custom_call.1} parent=1 // pred_check
      _
    $region23: #{tpu_custom_call.1} parent=1 // pred_check_branch
      %130 = sbr.rel (0) target = $region25
    $region24: #{tpu_custom_call.1} parent=1 // pred_region
      %s132 = ssub.s32 128, 128
      %133 = vsyncadd [#allocation4], %s132
      %s134 = sshll.u32 [#allocation7], 4
      %s135 = int_to_ptr.vmem [resolvable:$true] %s134
      %140 = dma.vmem_to_hbm [thread:$0]  %s135, 128, %s3, [#allocation4], 64, 64, 4
    $region25: #{tpu_custom_call.1} parent=1 // pred_fallthru
      _
    // Predicated region
    $region26: #{tpu_custom_call.1} parent=1 // pred_check
      _
    $region27: #{tpu_custom_call.1} parent=1 // pred_check_branch
      %142 = sbr.rel (0) target = $region29
    $region28: #{tpu_custom_call.1} parent=1 // pred_region
      %143 = dma.done [#allocation4], 128
    $region29: #{tpu_custom_call.1} parent=1 // pred_fallthru
      _
    %144 = vsyncpa [#allocation3], 1
    %145 = vsyncpa [#allocation6], 1
    %146 = vsyncpa [#allocation4], 1

</llo_original>
